<compile_context>
chip_gen: v7x
topology: tpu7x:2x2x1
jax: 0.10.0
libtpu: 0.0.40
codegen_flags: <defaults>
</compile_context>

<pallas_src>
import functools

import jax
import jax.numpy as jnp
from jax.experimental import pallas as pl
from jax.experimental.pallas import tpu as pltpu

INPUT_SIZE = 4
HIDDEN1 = 3
HIDDEN2 = 2
OUTPUT_SIZE = 1
LANE = 128

# Flat offsets into the packed SMEM parameter table (weights stored [in, out]).
_W1_OFF = 0
_B1_OFF = _W1_OFF + INPUT_SIZE * HIDDEN1
_W2_OFF = _B1_OFF + HIDDEN1
_B2_OFF = _W2_OFF + HIDDEN1 * HIDDEN2
_W3_OFF = _B2_OFF + HIDDEN2
_B3_OFF = _W3_OFF + HIDDEN2 * OUTPUT_SIZE
_N_PARAMS = _B3_OFF + OUTPUT_SIZE  # 26 scalars


def mlp_kernel(x_ref, p_ref, o_ref, *, chunk):
    """One batch tile of the 3-layer MLP, computed entirely on the VPU.

    x_ref:  (INPUT_SIZE, tg, 128) f32 in VMEM  (batch dense on sublane/lane)
    p_ref:  (26,) f32 packed weights/biases in SMEM (resident)
    o_ref:  (OUTPUT_SIZE, tg, 128) f32 in VMEM
    chunk:  sublane-group chunk size of the inner loop (8/16/32)
    """
    # Hoist the 26 SMEM scalar reads out of the chunk loop (once per step).
    w1 = [[p_ref[_W1_OFF + i * HIDDEN1 + j] for j in range(HIDDEN1)]
          for i in range(INPUT_SIZE)]
    b1 = [p_ref[_B1_OFF + j] for j in range(HIDDEN1)]
    w2 = [[p_ref[_W2_OFF + j * HIDDEN2 + k] for k in range(HIDDEN2)]
          for j in range(HIDDEN1)]
    b2 = [p_ref[_B2_OFF + k] for k in range(HIDDEN2)]
    w3 = [[p_ref[_W3_OFF + k * OUTPUT_SIZE + n] for n in range(OUTPUT_SIZE)]
          for k in range(HIDDEN2)]
    b3 = [p_ref[_B3_OFF + n] for n in range(OUTPUT_SIZE)]

    n_chunks = x_ref.shape[1] // chunk

    @pl.loop(0, n_chunks)
    def _(c):
        row = pl.multiple_of(c * chunk, chunk)

        # Load each feature row for this chunk: dense (chunk, 128) f32 slabs.
        xs = [x_ref[i, pl.ds(row, chunk), :] for i in range(INPUT_SIZE)]

        # fc1 + relu1: h1[j] = relu(sum_i w1[i, j] * x[i] + b1[j])
        h1 = []
        for j in range(HIDDEN1):
            acc = xs[0] * w1[0][j]
            for i in range(1, INPUT_SIZE):
                acc = acc + xs[i] * w1[i][j]
            h1.append(jnp.maximum(acc + b1[j], 0.0))

        # fc2 + relu2
        h2 = []
        for k in range(HIDDEN2):
            acc = h1[0] * w2[0][k]
            for j in range(1, HIDDEN1):
                acc = acc + h1[j] * w2[j][k]
            h2.append(jnp.maximum(acc + b2[k], 0.0))

        # fc3 (no activation)
        for n in range(OUTPUT_SIZE):
            acc = h2[0] * w3[0][n]
            for k in range(1, HIDDEN2):
                acc = acc + h2[k] * w3[k][n]
            o_ref[n, pl.ds(row, chunk), :] = (acc + b3[n]).astype(o_ref.dtype)


def simple_nn_forward(x, params, *, block_g=1024):
    """x: [B, INPUT_SIZE] f32  ->  [B, OUTPUT_SIZE] f32.

    block_g = sublane tile of 128-row lane groups (block_g * 128 batch rows per
    grid step).  Rounded to a multiple of 8; default 1024 (~2.5 MiB/step).
    """
    w1, b1, w2, b2, w3, b3 = params
    B = x.shape[0]

    # Round the requested tile to the sublane granule (BlockSpec (8,128) rule).
    block_g = max(8, ((int(block_g) + 7) // 8) * 8)

    # Batch-dense layout: [B,4] -> [4,B] -> pad trailing axis -> [4, Gp, 128].
    # Transpose-then-pad lets XLA fuse the relayout into a single copy.
    G = pl.cdiv(B, LANE)
    Gp = ((G + 7) // 8) * 8          # pad only to the sublane granule, not tg
    Bp = Gp * LANE
    x_t = jnp.pad(x.astype(jnp.float32).T, ((0, 0), (0, Bp - B)))
    x_t = x_t.reshape(INPUT_SIZE, Gp, LANE)

    tg = min(block_g, Gp)
    grid = (pl.cdiv(Gp, tg),)        # partial edge block is masked by Pallas

    # Largest of (32, 16, 8) dividing tg -> bounded live vregs per chunk.
    chunk = 32 if tg % 32 == 0 else (16 if tg % 16 == 0 else 8)

    # One flat f32 parameter table, resident in SMEM across the whole grid.
    p_flat = jnp.concatenate([
        w1.reshape(-1), b1.reshape(-1),
        w2.reshape(-1), b2.reshape(-1),
        w3.reshape(-1), b3.reshape(-1),
    ]).astype(jnp.float32)
    assert p_flat.shape[0] == _N_PARAMS

    # Derive the VMEM limit from the actual double-buffered block footprint.
    in_block_bytes = INPUT_SIZE * tg * LANE * 4
    out_block_bytes = OUTPUT_SIZE * tg * LANE * 4
    vmem_limit = int(min(100 << 20,
                         max(32 << 20,
                             2 * (in_block_bytes + out_block_bytes) + (8 << 20))))

    smem = pl.BlockSpec(memory_space=pltpu.MemorySpace.SMEM)

    out = pl.pallas_call(
        functools.partial(mlp_kernel, chunk=chunk),
        out_shape=jax.ShapeDtypeStruct((OUTPUT_SIZE, Gp, LANE), jnp.float32),
        grid_spec=pltpu.PrefetchScalarGridSpec(
            num_scalar_prefetch=0,
            grid=grid,
            in_specs=[
                pl.BlockSpec((INPUT_SIZE, tg, LANE), lambda i: (0, i, 0)),
                smem,                                   # packed params, resident
            ],
            out_specs=pl.BlockSpec((OUTPUT_SIZE, tg, LANE), lambda i: (0, i, 0)),
        ),
        compiler_params=pltpu.CompilerParams(
            dimension_semantics=("parallel",),
            vmem_limit_bytes=vmem_limit,
        ),
    )(x_t, p_flat)

    # [OUT, Gp, 128] -> [OUT, Bp] -> [Bp, OUT] -> strip batch padding.
    return out.reshape(OUTPUT_SIZE, Bp).T[:B]


def init_params(key):
    """Deterministic init mimicking nn.Linear default (uniform +-1/sqrt(fan_in)).

    Weights stored as [in, out] (equivalent to PyTorch's x @ W.T with W [out, in]);
    biases stored as 1-D [out].
    """
    def linear_init(k, fan_in, fan_out):
        kw, kb = jax.random.split(k)
        bound = 1.0 / jnp.sqrt(fan_in)
        w = jax.random.uniform(kw, (fan_in, fan_out), jnp.float32, -bound, bound)
        b = jax.random.uniform(kb, (fan_out,), jnp.float32, -bound, bound)
        return w, b

    k1, k2, k3 = jax.random.split(key, 3)
    w1, b1 = linear_init(k1, INPUT_SIZE, HIDDEN1)
    w2, b2 = linear_init(k2, HIDDEN1, HIDDEN2)
    w3, b3 = linear_init(k3, HIDDEN2, OUTPUT_SIZE)
    return (w1, b1, w2, b2, w3, b3)


def reference_forward(x, params):
    w1, b1, w2, b2, w3, b3 = params
    h1 = jnp.maximum(x @ w1 + b1, 0.0)
    h2 = jnp.maximum(h1 @ w2 + b2, 0.0)
    return h2 @ w3 + b3


if __name__ == "__main__":
    key = jax.random.PRNGKey(0)
    kx, kp = jax.random.split(key)
    params = init_params(kp)

    # Small example matching the module scale: batch=8, input_size=4.
    x_small = jax.random.normal(kx, (8, INPUT_SIZE), jnp.float32)
    out_small = jax.block_until_ready(simple_nn_forward(x_small, params))
    ref_small = reference_forward(x_small, params)
    assert out_small.shape == (8, OUTPUT_SIZE)
    assert jnp.allclose(out_small, ref_small, atol=1e-5, rtol=1e-5)

    # Ragged batch, multi-step grid (Gp=16, tg=8 -> 2 grid steps).
    x_a = jax.random.normal(kx, (1500, INPUT_SIZE), jnp.float32)
    out_a = jax.block_until_ready(simple_nn_forward(x_a, params, block_g=8))
    assert out_a.shape == (1500, OUTPUT_SIZE)
    assert jnp.allclose(out_a, reference_forward(x_a, params), atol=1e-5, rtol=1e-5)

    # Partial edge block (Gp=24, tg=16 -> 2 steps, last one half-masked).
    x_b = jax.random.normal(kx, (3000, INPUT_SIZE), jnp.float32)
    out_b = jax.block_until_ready(simple_nn_forward(x_b, params, block_g=16))
    assert out_b.shape == (3000, OUTPUT_SIZE)
    assert jnp.allclose(out_b, reference_forward(x_b, params), atol=1e-5, rtol=1e-5)

    # Larger batch exercising the inner chunk loop (Gp=128, tg=128, chunk=32).
    x_c = jax.random.normal(kx, (16384, INPUT_SIZE), jnp.float32)
    out_c = jax.block_until_ready(simple_nn_forward(x_c, params))
    assert out_c.shape == (16384, OUTPUT_SIZE)
    assert jnp.allclose(out_c, reference_forward(x_c, params), atol=1e-5, rtol=1e-5)

    print("KERNEL_OK")
</pallas_src>

<mosaic_0001>
module attributes {stable_mosaic.version = 11 : i64} {
  func.func @mlp_kernel(%arg0: i32, %arg1: memref<4x8x128xf32, #tpu.memory_space<vmem>>, %arg2: memref<26xf32, #tpu.memory_space<smem>>, %arg3: memref<1x8x128xf32, #tpu.memory_space<vmem>>) attributes {dimension_semantics = [#tpu.dimension_semantics<parallel>], iteration_bounds = array<i64: 1>, scalar_prefetch = 0 : i64, scratch_operands = 0 : i64, tpu.core_type = #tpu.core_type<tc>, window_params = [{transform_indices = @transform_0, window_bounds = array<i64: 4, 8, 128>}, {transform_indices = @transform_1, window_bounds = array<i64: 26>}, {transform_indices = @transform_2, window_bounds = array<i64: 1, 8, 128>}]} {
    %c0 = arith.constant 0 : index
    %0 = memref.load %arg2[%c0] : memref<26xf32, #tpu.memory_space<smem>>
    %c1 = arith.constant 1 : index
    %1 = memref.load %arg2[%c1] : memref<26xf32, #tpu.memory_space<smem>>
    %c2 = arith.constant 2 : index
    %2 = memref.load %arg2[%c2] : memref<26xf32, #tpu.memory_space<smem>>
    %c3 = arith.constant 3 : index
    %3 = memref.load %arg2[%c3] : memref<26xf32, #tpu.memory_space<smem>>
    %c4 = arith.constant 4 : index
    %4 = memref.load %arg2[%c4] : memref<26xf32, #tpu.memory_space<smem>>
    %c5 = arith.constant 5 : index
    %5 = memref.load %arg2[%c5] : memref<26xf32, #tpu.memory_space<smem>>
    %c6 = arith.constant 6 : index
    %6 = memref.load %arg2[%c6] : memref<26xf32, #tpu.memory_space<smem>>
    %c7 = arith.constant 7 : index
    %7 = memref.load %arg2[%c7] : memref<26xf32, #tpu.memory_space<smem>>
    %c8 = arith.constant 8 : index
    %8 = memref.load %arg2[%c8] : memref<26xf32, #tpu.memory_space<smem>>
    %c9 = arith.constant 9 : index
    %9 = memref.load %arg2[%c9] : memref<26xf32, #tpu.memory_space<smem>>
    %c10 = arith.constant 10 : index
    %10 = memref.load %arg2[%c10] : memref<26xf32, #tpu.memory_space<smem>>
    %c11 = arith.constant 11 : index
    %11 = memref.load %arg2[%c11] : memref<26xf32, #tpu.memory_space<smem>>
    %c12 = arith.constant 12 : index
    %12 = memref.load %arg2[%c12] : memref<26xf32, #tpu.memory_space<smem>>
    %c13 = arith.constant 13 : index
    %13 = memref.load %arg2[%c13] : memref<26xf32, #tpu.memory_space<smem>>
    %c14 = arith.constant 14 : index
    %14 = memref.load %arg2[%c14] : memref<26xf32, #tpu.memory_space<smem>>
    %c15 = arith.constant 15 : index
    %15 = memref.load %arg2[%c15] : memref<26xf32, #tpu.memory_space<smem>>
    %c16 = arith.constant 16 : index
    %16 = memref.load %arg2[%c16] : memref<26xf32, #tpu.memory_space<smem>>
    %c17 = arith.constant 17 : index
    %17 = memref.load %arg2[%c17] : memref<26xf32, #tpu.memory_space<smem>>
    %c18 = arith.constant 18 : index
    %18 = memref.load %arg2[%c18] : memref<26xf32, #tpu.memory_space<smem>>
    %c19 = arith.constant 19 : index
    %19 = memref.load %arg2[%c19] : memref<26xf32, #tpu.memory_space<smem>>
    %c20 = arith.constant 20 : index
    %20 = memref.load %arg2[%c20] : memref<26xf32, #tpu.memory_space<smem>>
    %c21 = arith.constant 21 : index
    %21 = memref.load %arg2[%c21] : memref<26xf32, #tpu.memory_space<smem>>
    %c22 = arith.constant 22 : index
    %22 = memref.load %arg2[%c22] : memref<26xf32, #tpu.memory_space<smem>>
    %c23 = arith.constant 23 : index
    %23 = memref.load %arg2[%c23] : memref<26xf32, #tpu.memory_space<smem>>
    %c24 = arith.constant 24 : index
    %24 = memref.load %arg2[%c24] : memref<26xf32, #tpu.memory_space<smem>>
    %c25 = arith.constant 25 : index
    %25 = memref.load %arg2[%c25] : memref<26xf32, #tpu.memory_space<smem>>
    %c0_i32 = arith.constant 0 : i32
    %c1_i32 = arith.constant 1 : i32
    %26 = arith.muli %c0_i32, %c1_i32 : i32
    %c0_i32_0 = arith.constant 0 : i32
    %27 = arith.addi %c0_i32_0, %26 : i32
    %c8_i32 = arith.constant 8 : i32
    %28 = arith.muli %27, %c8_i32 : i32
    %29 = tpu.assume_multiple %28, 8 : i32
    %c0_1 = arith.constant 0 : index
    %30 = arith.index_cast %29 : i32 to index
    %c0_2 = arith.constant 0 : index
    %31 = vector.load %arg1[%c0_1, %30, %c0_2] : memref<4x8x128xf32, #tpu.memory_space<vmem>>, vector<1x8x128xf32>
    %32 = vector.shape_cast %31 : vector<1x8x128xf32> to vector<8x128xf32>
    %c1_3 = arith.constant 1 : index
    %33 = arith.index_cast %29 : i32 to index
    %c0_4 = arith.constant 0 : index
    %34 = vector.load %arg1[%c1_3, %33, %c0_4] : memref<4x8x128xf32, #tpu.memory_space<vmem>>, vector<1x8x128xf32>
    %35 = vector.shape_cast %34 : vector<1x8x128xf32> to vector<8x128xf32>
    %c2_5 = arith.constant 2 : index
    %36 = arith.index_cast %29 : i32 to index
    %c0_6 = arith.constant 0 : index
    %37 = vector.load %arg1[%c2_5, %36, %c0_6] : memref<4x8x128xf32, #tpu.memory_space<vmem>>, vector<1x8x128xf32>
    %38 = vector.shape_cast %37 : vector<1x8x128xf32> to vector<8x128xf32>
    %c3_7 = arith.constant 3 : index
    %39 = arith.index_cast %29 : i32 to index
    %c0_8 = arith.constant 0 : index
    %40 = vector.load %arg1[%c3_7, %39, %c0_8] : memref<4x8x128xf32, #tpu.memory_space<vmem>>, vector<1x8x128xf32>
    %41 = vector.shape_cast %40 : vector<1x8x128xf32> to vector<8x128xf32>
    %42 = vector.broadcast %0 : f32 to vector<8x128xf32>
    %43 = arith.mulf %32, %42 : vector<8x128xf32>
    %44 = vector.broadcast %3 : f32 to vector<8x128xf32>
    %45 = arith.mulf %35, %44 : vector<8x128xf32>
    %46 = arith.addf %43, %45 : vector<8x128xf32>
    %47 = vector.broadcast %6 : f32 to vector<8x128xf32>
    %48 = arith.mulf %38, %47 : vector<8x128xf32>
    %49 = arith.addf %46, %48 : vector<8x128xf32>
    %50 = vector.broadcast %9 : f32 to vector<8x128xf32>
    %51 = arith.mulf %41, %50 : vector<8x128xf32>
    %52 = arith.addf %49, %51 : vector<8x128xf32>
    %53 = vector.broadcast %12 : f32 to vector<8x128xf32>
    %54 = arith.addf %52, %53 : vector<8x128xf32>
    %cst = arith.constant 0.000000e+00 : f32
    %55 = vector.broadcast %cst : f32 to vector<8x128xf32>
    %56 = arith.maximumf %54, %55 : vector<8x128xf32>
    %57 = vector.broadcast %1 : f32 to vector<8x128xf32>
    %58 = arith.mulf %32, %57 : vector<8x128xf32>
    %59 = vector.broadcast %4 : f32 to vector<8x128xf32>
    %60 = arith.mulf %35, %59 : vector<8x128xf32>
    %61 = arith.addf %58, %60 : vector<8x128xf32>
    %62 = vector.broadcast %7 : f32 to vector<8x128xf32>
    %63 = arith.mulf %38, %62 : vector<8x128xf32>
    %64 = arith.addf %61, %63 : vector<8x128xf32>
    %65 = vector.broadcast %10 : f32 to vector<8x128xf32>
    %66 = arith.mulf %41, %65 : vector<8x128xf32>
    %67 = arith.addf %64, %66 : vector<8x128xf32>
    %68 = vector.broadcast %13 : f32 to vector<8x128xf32>
    %69 = arith.addf %67, %68 : vector<8x128xf32>
    %cst_9 = arith.constant 0.000000e+00 : f32
    %70 = vector.broadcast %cst_9 : f32 to vector<8x128xf32>
    %71 = arith.maximumf %69, %70 : vector<8x128xf32>
    %72 = vector.broadcast %2 : f32 to vector<8x128xf32>
    %73 = arith.mulf %32, %72 : vector<8x128xf32>
    %74 = vector.broadcast %5 : f32 to vector<8x128xf32>
    %75 = arith.mulf %35, %74 : vector<8x128xf32>
    %76 = arith.addf %73, %75 : vector<8x128xf32>
    %77 = vector.broadcast %8 : f32 to vector<8x128xf32>
    %78 = arith.mulf %38, %77 : vector<8x128xf32>
    %79 = arith.addf %76, %78 : vector<8x128xf32>
    %80 = vector.broadcast %11 : f32 to vector<8x128xf32>
    %81 = arith.mulf %41, %80 : vector<8x128xf32>
    %82 = arith.addf %79, %81 : vector<8x128xf32>
    %83 = vector.broadcast %14 : f32 to vector<8x128xf32>
    %84 = arith.addf %82, %83 : vector<8x128xf32>
    %cst_10 = arith.constant 0.000000e+00 : f32
    %85 = vector.broadcast %cst_10 : f32 to vector<8x128xf32>
    %86 = arith.maximumf %84, %85 : vector<8x128xf32>
    %87 = vector.broadcast %15 : f32 to vector<8x128xf32>
    %88 = arith.mulf %56, %87 : vector<8x128xf32>
    %89 = vector.broadcast %17 : f32 to vector<8x128xf32>
    %90 = arith.mulf %71, %89 : vector<8x128xf32>
    %91 = arith.addf %88, %90 : vector<8x128xf32>
    %92 = vector.broadcast %19 : f32 to vector<8x128xf32>
    %93 = arith.mulf %86, %92 : vector<8x128xf32>
    %94 = arith.addf %91, %93 : vector<8x128xf32>
    %95 = vector.broadcast %21 : f32 to vector<8x128xf32>
    %96 = arith.addf %94, %95 : vector<8x128xf32>
    %cst_11 = arith.constant 0.000000e+00 : f32
    %97 = vector.broadcast %cst_11 : f32 to vector<8x128xf32>
    %98 = arith.maximumf %96, %97 : vector<8x128xf32>
    %99 = vector.broadcast %16 : f32 to vector<8x128xf32>
    %100 = arith.mulf %56, %99 : vector<8x128xf32>
    %101 = vector.broadcast %18 : f32 to vector<8x128xf32>
    %102 = arith.mulf %71, %101 : vector<8x128xf32>
    %103 = arith.addf %100, %102 : vector<8x128xf32>
    %104 = vector.broadcast %20 : f32 to vector<8x128xf32>
    %105 = arith.mulf %86, %104 : vector<8x128xf32>
    %106 = arith.addf %103, %105 : vector<8x128xf32>
    %107 = vector.broadcast %22 : f32 to vector<8x128xf32>
    %108 = arith.addf %106, %107 : vector<8x128xf32>
    %cst_12 = arith.constant 0.000000e+00 : f32
    %109 = vector.broadcast %cst_12 : f32 to vector<8x128xf32>
    %110 = arith.maximumf %108, %109 : vector<8x128xf32>
    %111 = vector.broadcast %23 : f32 to vector<8x128xf32>
    %112 = arith.mulf %98, %111 : vector<8x128xf32>
    %113 = vector.broadcast %24 : f32 to vector<8x128xf32>
    %114 = arith.mulf %110, %113 : vector<8x128xf32>
    %115 = arith.addf %112, %114 : vector<8x128xf32>
    %116 = vector.broadcast %25 : f32 to vector<8x128xf32>
    %117 = arith.addf %115, %116 : vector<8x128xf32>
    %c0_13 = arith.constant 0 : index
    %118 = arith.index_cast %29 : i32 to index
    %c0_14 = arith.constant 0 : index
    %119 = vector.load %arg3[%c0_13, %118, %c0_14] : memref<1x8x128xf32, #tpu.memory_space<vmem>>, vector<1x8x128xf32>
    %120 = vector.shape_cast %119 : vector<1x8x128xf32> to vector<8x128xf32>
    %121 = vector.shape_cast %117 : vector<8x128xf32> to vector<1x8x128xf32>
    tpu.vector_store %arg3[%c0_13, %118, %c0_14], %121 {strides = array<i32>} : memref<1x8x128xf32, #tpu.memory_space<vmem>>, vector<1x8x128xf32>,
    %c1_i32_15 = arith.constant 1 : i32
    return
  }
  func.func @transform_0(%arg0: i32) -> (i32, i32, i32) {
    %c0_i32 = arith.constant 0 : i32
    %c0_i32_0 = arith.constant 0 : i32
    %c0_i32_1 = arith.constant 0 : i32
    return %c0_i32, %arg0, %c0_i32_0 : i32, i32, i32
  }
  func.func @transform_1(%arg0: i32) -> i32 {
    %c0_i32 = arith.constant 0 : i32
    %c0_i32_0 = arith.constant 0 : i32
    return %c0_i32 : i32
  }
  func.func @transform_2(%arg0: i32) -> (i32, i32, i32) {
    %c0_i32 = arith.constant 0 : i32
    %c0_i32_0 = arith.constant 0 : i32
    %c0_i32_1 = arith.constant 0 : i32
    return %c0_i32, %arg0, %c0_i32_0 : i32, i32, i32
  }
}

</mosaic_0001>

<llo_original>
// kernel: tpu_custom_call.1
$region0: #{tpu_custom_call.1}
  #allocation0 [shape = 'u32[]', space=smem, size = 0x4, offset = 0x4, fixed_abs, tag = 'smem constant byte address 0x4 - core index']
  #allocation1 [shape = 'u32[144,128]{1,0:T(1,128)}', space=vmem, size = 0x12000, scoped, tag = 'internal scratch']
  %s0 = inlined_call_operand.hbm [shape: f32[4,8,128], index: 0, kind: input, shape index: {}]
  %s1 = inlined_call_operand.vmem [shape: f32[26], index: 1, kind: input, shape index: {}]
  %s2 = inlined_call_operand.hbm [shape: f32[1,8,128], index: 2, kind: output, shape index: {}]
  %s3 = sld [smem:[#allocation0]]
  $region26: #{tpu_custom_call.1} parent=0
    _
  %s5 = ssub.s32 1, %s3
  %s6 = scalar_select 0, %s5, %s3
  $region1: #{tpu_custom_call.1} parent=0
    #allocation2 [shape = 'u8[16384]{0}', space=vmem, size = 0x4000, scoped, tag = 'input window, operand 0, single buffered']
    #allocation3 [shape = 's32[1]{0}', space=sflag, size = 0x4, scoped, tag = 'scoped memory for tpu_custom_call.1']
    #allocation4 [shape = 's32[1]{0}', space=sflag, size = 0x4, scoped, tag = 'scoped memory for tpu_custom_call.1']
    #allocation5 [shape = 's32[1]{0}', space=sflag, size = 0x4, scoped, tag = 'scoped memory for tpu_custom_call.1']
    #allocation6 [shape = 'u8[512]{0}', space=smem, size = 0x200, scoped, tag = 'input window, operand 1, single buffered']
    #allocation7 [shape = 'u8[4096]{0}', space=vmem, size = 0x1000, scoped, tag = 'output window, operand 0, single buffered']
    %7 = vsyncpa [#allocation3], 0
    %8 = vsyncpa [#allocation5], 0
    %9 = vsyncpa [#allocation4], 0
    // Predicated region
    $region2: #{tpu_custom_call.1} parent=1 // pred_check
      _
    $region3: #{tpu_custom_call.1} parent=1 // pred_check_branch
      %11 = sbr.rel (0) target = $region5
    $region4: #{tpu_custom_call.1} parent=1 // pred_region
      %s13 = ssub.s32 512, 512
      %14 = vsyncadd [#allocation3], %s13
      %s15 = sshll.u32 [#allocation2], 4
      %s16 = int_to_ptr.vmem [resolvable:$true] %s15
      %21 = dma.hbm_to_vmem [thread:$0]  %s0, 512, %s16, [#allocation3], 128, 128, 8
    $region5: #{tpu_custom_call.1} parent=1 // pred_fallthru
      _
    // Predicated region
    $region6: #{tpu_custom_call.1} parent=1 // pred_check
      _
    $region7: #{tpu_custom_call.1} parent=1 // pred_check_branch
      %23 = sbr.rel (0) target = $region9
    $region8: #{tpu_custom_call.1} parent=1 // pred_region
      %s25 = ssub.s32 16, 16
      %26 = vsyncadd [#allocation5], %s25
      %s28 = sshll.u32 %s1, 4
      %s29 = int_to_ptr.vmem [resolvable:$true] %s28
      %31 = dma.vmem_to_smem %s29, 16, [#allocation6], [#allocation5]
    $region9: #{tpu_custom_call.1} parent=1 // pred_fallthru
      _
    // Predicated region
    $region10: #{tpu_custom_call.1} parent=1 // pred_check
      _
    $region11: #{tpu_custom_call.1} parent=1 // pred_check_branch
      %33 = sbr.rel (0) target = $region13
    $region12: #{tpu_custom_call.1} parent=1 // pred_region
      %34 = dma.done [#allocation3], 512
    $region13: #{tpu_custom_call.1} parent=1 // pred_fallthru
      _
    // Predicated region
    $region14: #{tpu_custom_call.1} parent=1 // pred_check
      _
    $region15: #{tpu_custom_call.1} parent=1 // pred_check_branch
      %36 = sbr.rel (0) target = $region17
    $region16: #{tpu_custom_call.1} parent=1 // pred_region
      %37 = dma.done [#allocation5], 16
    $region17: #{tpu_custom_call.1} parent=1 // pred_fallthru
      _
    %38 = sfence
    %s39 = sld [smem:[#allocation6]]
    %s40 = sld [smem:[#allocation6 + $0x1]]
    %s41 = sld [smem:[#allocation6 + $0x2]]
    %s42 = sld [smem:[#allocation6 + $0x3]]
    %s43 = sld [smem:[#allocation6 + $0x4]]
    %s44 = sld [smem:[#allocation6 + $0x5]]
    %s45 = sld [smem:[#allocation6 + $0x6]]
    %s46 = sld [smem:[#allocation6 + $0x7]]
    %s47 = sld [smem:[#allocation6 + $0x8]]
    %s48 = sld [smem:[#allocation6 + $0x9]]
    %s49 = sld [smem:[#allocation6 + $0xa]]
    %s50 = sld [smem:[#allocation6 + $0xb]]
    %s51 = sld [smem:[#allocation6 + $0xc]]
    %s52 = sld [smem:[#allocation6 + $0xd]]
    %s53 = sld [smem:[#allocation6 + $0xe]]
    %s54 = sld [smem:[#allocation6 + $0xf]]
    %s55 = sld [smem:[#allocation6 + $0x10]]
    %s56 = sld [smem:[#allocation6 + $0x11]]
    %s57 = sld [smem:[#allocation6 + $0x12]]
    %s58 = sld [smem:[#allocation6 + $0x13]]
    %s59 = sld [smem:[#allocation6 + $0x14]]
    %s60 = sld [smem:[#allocation6 + $0x15]]
    %s61 = sld [smem:[#allocation6 + $0x16]]
    %s62 = sld [smem:[#allocation6 + $0x17]]
    %s63 = sld [smem:[#allocation6 + $0x18]]
    %s64 = sld [smem:[#allocation6 + $0x19]]
    %v65 = vld [vmem:[#allocation2] sm:$0xff]
    %s66 = sadd.s32 0, 8
    %s67 = scalar_lea.vmem [#allocation2], %s66
    %v68 = vld [vmem:[%s67] sm:$0xff]
    %s69 = sadd.s32 0, 16
    %s70 = scalar_lea.vmem [#allocation2], %s69
    %v71 = vld [vmem:[%s70] sm:$0xff]
    %s72 = sadd.s32 0, 24
    %s73 = scalar_lea.vmem [#allocation2], %s72
    %v74 = vld [vmem:[%s73] sm:$0xff]
    %v75 = vstv %s39
    %v76 = vmul.f32 %v65, %v75
    %v77 = vstv %s42
    %v78 = vmul.f32 %v68, %v77
    %v79 = vadd.f32 %v76, %v78
    %v80 = vstv %s45
    %v81 = vmul.f32 %v71, %v80
    %v82 = vadd.f32 %v79, %v81
    %v83 = vstv %s48
    %v84 = vmul.f32 %v74, %v83
    %v85 = vadd.f32 %v82, %v84
    %v86 = vstv %s51
    %v87 = vadd.f32 %v85, %v86
    %v88 = vmax.f32 %v87, 0.0
    %v89 = vstv %s40
    %v90 = vmul.f32 %v65, %v89
    %v91 = vstv %s43
    %v92 = vmul.f32 %v68, %v91
    %v93 = vadd.f32 %v90, %v92
    %v94 = vstv %s46
    %v95 = vmul.f32 %v71, %v94
    %v96 = vadd.f32 %v93, %v95
    %v97 = vstv %s49
    %v98 = vmul.f32 %v74, %v97
    %v99 = vadd.f32 %v96, %v98
    %v100 = vstv %s52
    %v101 = vadd.f32 %v99, %v100
    %v102 = vmax.f32 %v101, 0.0
    %v103 = vstv %s41
    %v104 = vmul.f32 %v65, %v103
    %v105 = vstv %s44
    %v106 = vmul.f32 %v68, %v105
    %v107 = vadd.f32 %v104, %v106
    %v108 = vstv %s47
    %v109 = vmul.f32 %v71, %v108
    %v110 = vadd.f32 %v107, %v109
    %v111 = vstv %s50
    %v112 = vmul.f32 %v74, %v111
    %v113 = vadd.f32 %v110, %v112
    %v114 = vstv %s53
    %v115 = vadd.f32 %v113, %v114
    %v116 = vmax.f32 %v115, 0.0
    %v117 = vstv %s54
    %v118 = vmul.f32 %v88, %v117
    %v119 = vstv %s56
    %v120 = vmul.f32 %v102, %v119
    %v121 = vadd.f32 %v118, %v120
    %v122 = vstv %s58
    %v123 = vmul.f32 %v116, %v122
    %v124 = vadd.f32 %v121, %v123
    %v125 = vstv %s60
    %v126 = vadd.f32 %v124, %v125
    %v127 = vmax.f32 %v126, 0.0
    %v128 = vstv %s55
    %v129 = vmul.f32 %v88, %v128
    %v130 = vstv %s57
    %v131 = vmul.f32 %v102, %v130
    %v132 = vadd.f32 %v129, %v131
    %v133 = vstv %s59
    %v134 = vmul.f32 %v116, %v133
    %v135 = vadd.f32 %v132, %v134
    %v136 = vstv %s61
    %v137 = vadd.f32 %v135, %v136
    %v138 = vmax.f32 %v137, 0.0
    %v139 = vstv %s62
    %v140 = vmul.f32 %v127, %v139
    %v141 = vstv %s63
    %v142 = vmul.f32 %v138, %v141
    %v143 = vadd.f32 %v140, %v142
    %v144 = vstv %s64
    %v145 = vadd.f32 %v143, %v144
    %146 = vst [vmem:[#allocation7] sm:$0xff] %v145
    // Predicated region
    $region18: #{tpu_custom_call.1} parent=1 // pred_check
      _
    $region19: #{tpu_custom_call.1} parent=1 // pred_check_branch
      %148 = sbr.rel (0) target = $region21
    $region20: #{tpu_custom_call.1} parent=1 // pred_region
      %s150 = ssub.s32 128, 128
      %151 = vsyncadd [#allocation4], %s150
      %s153 = sshll.u32 [#allocation7], 4
      %s154 = int_to_ptr.vmem [resolvable:$true] %s153
      %156 = dma.vmem_to_hbm [thread:$0]  %s154, 128, %s2, [#allocation4]
    $region21: #{tpu_custom_call.1} parent=1 // pred_fallthru
      _
    // Predicated region
    $region22: #{tpu_custom_call.1} parent=1 // pred_check
      _
    $region23: #{tpu_custom_call.1} parent=1 // pred_check_branch
      %158 = sbr.rel (0) target = $region25
    $region24: #{tpu_custom_call.1} parent=1 // pred_region
      %159 = dma.done [#allocation4], 128
    $region25: #{tpu_custom_call.1} parent=1 // pred_fallthru
      _
    %160 = vsyncpa [#allocation3], 1
    %161 = vsyncpa [#allocation4], 1
    %162 = vsyncpa [#allocation5], 1

</llo_original>
